<compile_context>
chip_gen: v6e
topology: v6e:2x2x1
jax: 0.10.0
libtpu: 0.0.40
codegen_flags: <defaults>
</compile_context>

<pallas_src>
import functools

import jax
import jax.numpy as jnp
from jax.experimental import pallas as pl
from jax.experimental.pallas import tpu as pltpu

IMAGE_SIZE = 784
HIDDEN_SIZE = 256
OUT_PAD = 128          # final (256 -> 1) layer padded to 128 lanes for the MXU dot


def _leaky_relu(x, negative_slope=0.2):
    return jnp.where(x > 0, x, negative_slope * x)


def discriminator_kernel(x_ref, w1_ref, b1_ref, w2_ref, b2_ref, w3_ref, b3_ref,
                         o_ref):
    """Whole MLP forward for one batch tile. Weights resident in VMEM.

    x arrives as f32 and is cast to bf16 here (fused cast, no wrapper pass).
    Matmul operands are bf16, accumulation and all elementwise math are f32.
    """
    x = x_ref[...].astype(jnp.bfloat16)                                # (bm, 784)

    h1 = jnp.dot(x, w1_ref[...], preferred_element_type=jnp.float32)  # (bm, 256) f32
    h1 = _leaky_relu(h1 + b1_ref[...])

    h2 = jnp.dot(h1.astype(jnp.bfloat16), w2_ref[...],
                 preferred_element_type=jnp.float32)
    h2 = _leaky_relu(h2 + b2_ref[...])                                 # (bm, 256) f32

    h3 = jnp.dot(h2.astype(jnp.bfloat16), w3_ref[...],
                 preferred_element_type=jnp.float32)
    h3 = h3 + b3_ref[...]                                              # (bm, 128) padded

    z = h3[:, :1]                                                      # real column only
    o_ref[...] = 1.0 / (1.0 + jnp.exp(-z))                             # exact sigmoid


def prepare_params(params, matmul_dtype=jnp.bfloat16):
    """One-time weight preparation (transpose, cast, pad last layer). Reuse."""
    # PyTorch Linear stores W as (out, in); transpose to (in, out) for x @ W.
    w1 = params["w1"].T.astype(matmul_dtype)                               # (784, 256)
    b1 = params["b1"].reshape(1, HIDDEN_SIZE).astype(jnp.float32)          # (1, 256)
    w2 = params["w2"].T.astype(matmul_dtype)                               # (256, 256)
    b2 = params["b2"].reshape(1, HIDDEN_SIZE).astype(jnp.float32)          # (1, 256)
    w3 = jnp.pad(params["w3"].T.astype(jnp.float32),
                 ((0, 0), (0, OUT_PAD - 1))).astype(matmul_dtype)          # (256, 128)
    b3 = jnp.pad(params["b3"].reshape(1, 1).astype(jnp.float32),
                 ((0, 0), (0, OUT_PAD - 1)))                               # (1, 128)
    return {"w1": w1, "b1": b1, "w2": w2, "b2": b2, "w3": w3, "b3": b3}


def _pick_block_m(B, cap=512):
    """Tile the batch: >= 2 grid steps when possible (v7x megacore), big tiles
    for HBM-roofline throughput, capped so double-buffered x tiles stay well
    under every generation's default scoped VMEM (incl. v5e 16 MiB)."""
    bm = ((pl.cdiv(B, 2) + 7) // 8) * 8        # multiple of 8 (sublane constraint)
    return int(min(cap, max(8, bm)))


@functools.partial(jax.jit, static_argnames=("block_m",))
def discriminator_forward(x, prepped, block_m=None):
    """x: (B, 784) f32. prepped: output of prepare_params(). Returns (B, 1) f32.

    block_m=None auto-selects (cap 512). Raise toward 1024 for very large
    batches on v6e (raise vmem_limit_bytes if needed); keep <= ~512 on v5e.
    """
    B = x.shape[0]
    bm = block_m if block_m is not None else _pick_block_m(B)
    grid_m = pl.cdiv(B, bm)

    full = lambda shape: pl.BlockSpec(shape, lambda i: (0, 0))

    out = pl.pallas_call(
        discriminator_kernel,
        out_shape=jax.ShapeDtypeStruct((B, 1), jnp.float32),
        grid_spec=pltpu.PrefetchScalarGridSpec(
            num_scalar_prefetch=0,
            grid=(grid_m,),
            in_specs=[
                pl.BlockSpec((bm, IMAGE_SIZE), lambda i: (i, 0)),  # x tile (f32, unpadded)
                full((IMAGE_SIZE, HIDDEN_SIZE)),                   # w1 (784, 256)
                full((1, HIDDEN_SIZE)),                            # b1
                full((HIDDEN_SIZE, HIDDEN_SIZE)),                  # w2
                full((1, HIDDEN_SIZE)),                            # b2
                full((HIDDEN_SIZE, OUT_PAD)),                      # w3 (lane-padded)
                full((1, OUT_PAD)),                                # b3 (lane-padded)
            ],
            out_specs=pl.BlockSpec((bm, 1), lambda i: (i, 0)),     # (B, 1) output
        ),
        compiler_params=pltpu.CompilerParams(
            dimension_semantics=("parallel",)),                    # megacore sharding
    )(x, prepped["w1"], prepped["b1"], prepped["w2"], prepped["b2"],
      prepped["w3"], prepped["b3"])

    return out                                                     # (B, 1) f32


def init_params(key):
    """Deterministic init mimicking PyTorch nn.Linear default (U[-1/sqrt(in), 1/sqrt(in)])."""
    k1, k2, k3, k4, k5, k6 = jax.random.split(key, 6)

    def uniform(k, shape, fan_in):
        bound = 1.0 / jnp.sqrt(float(fan_in))
        return jax.random.uniform(k, shape, jnp.float32, -bound, bound)

    return {
        "w1": uniform(k1, (HIDDEN_SIZE, IMAGE_SIZE), IMAGE_SIZE),
        "b1": uniform(k2, (HIDDEN_SIZE,), IMAGE_SIZE),
        "w2": uniform(k3, (HIDDEN_SIZE, HIDDEN_SIZE), HIDDEN_SIZE),
        "b2": uniform(k4, (HIDDEN_SIZE,), HIDDEN_SIZE),
        "w3": uniform(k5, (1, HIDDEN_SIZE), HIDDEN_SIZE),
        "b3": uniform(k6, (1,), HIDDEN_SIZE),
    }


def reference_forward(x, params):
    """Pure-JAX f32 reference replicating the PyTorch module exactly."""
    h = x @ params["w1"].T + params["b1"]
    h = jnp.where(h > 0, h, 0.2 * h)
    h = h @ params["w2"].T + params["b2"]
    h = jnp.where(h > 0, h, 0.2 * h)
    h = h @ params["w3"].T + params["b3"]
    return jax.nn.sigmoid(h)


if __name__ == "__main__":
    key = jax.random.PRNGKey(0)
    pkey, xkey, xkey2 = jax.random.split(key, 3)

    params = init_params(pkey)
    prepped = prepare_params(params)          # one-time transpose/cast/pad

    # Small batch (single tile).
    batch = 8
    x = jax.random.normal(xkey, (batch, IMAGE_SIZE), jnp.float32)
    out = jax.block_until_ready(discriminator_forward(x, prepped))
    ref = reference_forward(x, params)
    assert out.shape == (batch, 1), out.shape
    # bf16 matmul operands -> loosened tolerance vs f32 reference.
    assert jnp.allclose(out, ref, atol=2e-2, rtol=2e-2), (
        f"max abs err {jnp.max(jnp.abs(out - ref))}")

    # Non-divisible batch: two grid steps + masked partial last tile.
    batch2 = 300
    x2 = jax.random.normal(xkey2, (batch2, IMAGE_SIZE), jnp.float32)
    out2 = jax.block_until_ready(discriminator_forward(x2, prepped))
    ref2 = reference_forward(x2, params)
    assert out2.shape == (batch2, 1), out2.shape
    assert jnp.allclose(out2, ref2, atol=2e-2, rtol=2e-2), (
        f"max abs err {jnp.max(jnp.abs(out2 - ref2))}")

    print("KERNEL_OK")
</pallas_src>

<mosaic_0001>
module attributes {stable_mosaic.version = 11 : i64} {
  func.func @discriminator_kernel(%arg0: i32, %arg1: memref<8x784xf32, #tpu.memory_space<vmem>>, %arg2: memref<784x256xbf16, #tpu.memory_space<vmem>>, %arg3: memref<1x256xf32, #tpu.memory_space<vmem>>, %arg4: memref<256x256xbf16, #tpu.memory_space<vmem>>, %arg5: memref<1x256xf32, #tpu.memory_space<vmem>>, %arg6: memref<256x128xbf16, #tpu.memory_space<vmem>>, %arg7: memref<1x128xf32, #tpu.memory_space<vmem>>, %arg8: memref<8x1xf32, #tpu.memory_space<vmem>>) attributes {dimension_semantics = [#tpu.dimension_semantics<parallel>], iteration_bounds = array<i64: 1>, scalar_prefetch = 0 : i64, scratch_operands = 0 : i64, tpu.core_type = #tpu.core_type<tc>, window_params = [{transform_indices = @transform_0, window_bounds = array<i64: 8, 784>}, {pipeline_mode = #tpu.pipeline_mode<synchronous>, transform_indices = @transform_1, window_bounds = array<i64: 784, 256>}, {pipeline_mode = #tpu.pipeline_mode<synchronous>, transform_indices = @transform_2, window_bounds = array<i64: 1, 256>}, {pipeline_mode = #tpu.pipeline_mode<synchronous>, transform_indices = @transform_3, window_bounds = array<i64: 256, 256>}, {pipeline_mode = #tpu.pipeline_mode<synchronous>, transform_indices = @transform_4, window_bounds = array<i64: 1, 256>}, {pipeline_mode = #tpu.pipeline_mode<synchronous>, transform_indices = @transform_5, window_bounds = array<i64: 256, 128>}, {pipeline_mode = #tpu.pipeline_mode<synchronous>, transform_indices = @transform_6, window_bounds = array<i64: 1, 128>}, {transform_indices = @transform_7, window_bounds = array<i64: 8, 1>}]} {
    %c0 = arith.constant 0 : index
    %c0_0 = arith.constant 0 : index
    %0 = vector.load %arg1[%c0, %c0_0] : memref<8x784xf32, #tpu.memory_space<vmem>>, vector<8x784xf32>
    %1 = arith.truncf %0 : vector<8x784xf32> to vector<8x784xbf16>
    %c0_1 = arith.constant 0 : index
    %c0_2 = arith.constant 0 : index
    %2 = vector.load %arg2[%c0_1, %c0_2] : memref<784x256xbf16, #tpu.memory_space<vmem>>, vector<784x256xbf16>
    %cst = arith.constant dense<0.000000e+00> : vector<8x256xf32>
    %3 = tpu.matmul %1, %2, %cst {dimension_numbers = #tpu.dot_dimension_numbers<[1], [0], [0], [1], [0, 0, 1, 1], [], []>} : vector<8x784xbf16>, vector<784x256xbf16>, vector<8x256xf32> -> vector<8x256xf32>
    %c0_3 = arith.constant 0 : index
    %c0_4 = arith.constant 0 : index
    %4 = vector.load %arg3[%c0_3, %c0_4] : memref<1x256xf32, #tpu.memory_space<vmem>>, vector<1x256xf32>
    %5 = vector.broadcast %4 : vector<1x256xf32> to vector<8x256xf32>
    %6 = arith.addf %3, %5 : vector<8x256xf32>
    %cst_5 = arith.constant 0.000000e+00 : f32
    %7 = vector.broadcast %cst_5 : f32 to vector<8x256xf32>
    %8 = arith.cmpf ogt, %6, %7 : vector<8x256xf32>
    %cst_6 = arith.constant 2.000000e-01 : f32
    %9 = vector.broadcast %cst_6 : f32 to vector<8x256xf32>
    %10 = arith.mulf %9, %6 : vector<8x256xf32>
    %11 = arith.select %8, %6, %10 : vector<8x256xi1>, vector<8x256xf32>
    %12 = arith.truncf %11 : vector<8x256xf32> to vector<8x256xbf16>
    %c0_7 = arith.constant 0 : index
    %c0_8 = arith.constant 0 : index
    %13 = vector.load %arg4[%c0_7, %c0_8] : memref<256x256xbf16, #tpu.memory_space<vmem>>, vector<256x256xbf16>
    %cst_9 = arith.constant dense<0.000000e+00> : vector<8x256xf32>
    %14 = tpu.matmul %12, %13, %cst_9 {dimension_numbers = #tpu.dot_dimension_numbers<[1], [0], [0], [1], [0, 0, 1, 1], [], []>} : vector<8x256xbf16>, vector<256x256xbf16>, vector<8x256xf32> -> vector<8x256xf32>
    %c0_10 = arith.constant 0 : index
    %c0_11 = arith.constant 0 : index
    %15 = vector.load %arg5[%c0_10, %c0_11] : memref<1x256xf32, #tpu.memory_space<vmem>>, vector<1x256xf32>
    %16 = vector.broadcast %15 : vector<1x256xf32> to vector<8x256xf32>
    %17 = arith.addf %14, %16 : vector<8x256xf32>
    %cst_12 = arith.constant 0.000000e+00 : f32
    %18 = vector.broadcast %cst_12 : f32 to vector<8x256xf32>
    %19 = arith.cmpf ogt, %17, %18 : vector<8x256xf32>
    %cst_13 = arith.constant 2.000000e-01 : f32
    %20 = vector.broadcast %cst_13 : f32 to vector<8x256xf32>
    %21 = arith.mulf %20, %17 : vector<8x256xf32>
    %22 = arith.select %19, %17, %21 : vector<8x256xi1>, vector<8x256xf32>
    %23 = arith.truncf %22 : vector<8x256xf32> to vector<8x256xbf16>
    %c0_14 = arith.constant 0 : index
    %c0_15 = arith.constant 0 : index
    %24 = vector.load %arg6[%c0_14, %c0_15] : memref<256x128xbf16, #tpu.memory_space<vmem>>, vector<256x128xbf16>
    %cst_16 = arith.constant dense<0.000000e+00> : vector<8x128xf32>
    %25 = tpu.matmul %23, %24, %cst_16 {dimension_numbers = #tpu.dot_dimension_numbers<[1], [0], [0], [1], [0, 0, 1, 1], [], []>} : vector<8x256xbf16>, vector<256x128xbf16>, vector<8x128xf32> -> vector<8x128xf32>
    %c0_17 = arith.constant 0 : index
    %c0_18 = arith.constant 0 : index
    %26 = vector.load %arg7[%c0_17, %c0_18] : memref<1x128xf32, #tpu.memory_space<vmem>>, vector<1x128xf32>
    %27 = vector.broadcast %26 : vector<1x128xf32> to vector<8x128xf32>
    %28 = arith.addf %25, %27 : vector<8x128xf32>
    %29 = vector.extract_strided_slice %28 {offsets = [0, 0], sizes = [8, 1], strides = [1, 1]} : vector<8x128xf32> to vector<8x1xf32>
    %cst_19 = arith.constant 0.000000e+00 : f32
    %30 = vector.broadcast %cst_19 : f32 to vector<8x1xf32>
    %31 = arith.subf %30, %29 : vector<8x1xf32>
    %32 = math.exp %31 : vector<8x1xf32>
    %cst_20 = arith.constant 1.000000e+00 : f32
    %33 = vector.broadcast %cst_20 : f32 to vector<8x1xf32>
    %34 = arith.addf %33, %32 : vector<8x1xf32>
    %cst_21 = arith.constant 1.000000e+00 : f32
    %35 = vector.broadcast %cst_21 : f32 to vector<8x1xf32>
    %36 = arith.divf %35, %34 : vector<8x1xf32>
    %c0_22 = arith.constant 0 : index
    %c0_23 = arith.constant 0 : index
    %37 = vector.load %arg8[%c0_22, %c0_23] : memref<8x1xf32, #tpu.memory_space<vmem>>, vector<8x1xf32>
    tpu.vector_store %arg8[%c0_22, %c0_23], %36 {strides = array<i32>} : memref<8x1xf32, #tpu.memory_space<vmem>>, vector<8x1xf32>,
    return
  }
  func.func @transform_0(%arg0: i32) -> (i32, i32) {
    %c0_i32 = arith.constant 0 : i32
    %c0_i32_0 = arith.constant 0 : i32
    return %arg0, %c0_i32 : i32, i32
  }
  func.func @transform_1(%arg0: i32) -> (i32, i32) {
    %c0_i32 = arith.constant 0 : i32
    %c0_i32_0 = arith.constant 0 : i32
    %c0_i32_1 = arith.constant 0 : i32
    return %c0_i32, %c0_i32_0 : i32, i32
  }
  func.func @transform_2(%arg0: i32) -> (i32, i32) {
    %c0_i32 = arith.constant 0 : i32
    %c0_i32_0 = arith.constant 0 : i32
    %c0_i32_1 = arith.constant 0 : i32
    return %c0_i32, %c0_i32_0 : i32, i32
  }
  func.func @transform_3(%arg0: i32) -> (i32, i32) {
    %c0_i32 = arith.constant 0 : i32
    %c0_i32_0 = arith.constant 0 : i32
    %c0_i32_1 = arith.constant 0 : i32
    return %c0_i32, %c0_i32_0 : i32, i32
  }
  func.func @transform_4(%arg0: i32) -> (i32, i32) {
    %c0_i32 = arith.constant 0 : i32
    %c0_i32_0 = arith.constant 0 : i32
    %c0_i32_1 = arith.constant 0 : i32
    return %c0_i32, %c0_i32_0 : i32, i32
  }
  func.func @transform_5(%arg0: i32) -> (i32, i32) {
    %c0_i32 = arith.constant 0 : i32
    %c0_i32_0 = arith.constant 0 : i32
    %c0_i32_1 = arith.constant 0 : i32
    return %c0_i32, %c0_i32_0 : i32, i32
  }
  func.func @transform_6(%arg0: i32) -> (i32, i32) {
    %c0_i32 = arith.constant 0 : i32
    %c0_i32_0 = arith.constant 0 : i32
    %c0_i32_1 = arith.constant 0 : i32
    return %c0_i32, %c0_i32_0 : i32, i32
  }
  func.func @transform_7(%arg0: i32) -> (i32, i32) {
    %c0_i32 = arith.constant 0 : i32
    %c0_i32_0 = arith.constant 0 : i32
    return %arg0, %c0_i32 : i32, i32
  }
}

</mosaic_0001>

<llo_original>
// kernel: discriminator_forward.1
$region0: #{discriminator_forward.1}
  #allocation0 [shape = 'u32[]', space=smem, size = 0x4, offset = 0x4, fixed_abs, tag = 'smem constant byte address 0x4 - core index']
  #allocation1 [shape = 'u32[144,128]{1,0:T(1,128)}', space=vmem, size = 0x12000, scoped, tag = 'internal scratch']
  %s0 = inlined_call_operand.hbm [shape: f32[8,784], index: 0, kind: input, shape index: {}]
  %s1 = inlined_call_operand.hbm [shape: bf16[784,256], index: 1, kind: input, shape index: {}]
  %s2 = inlined_call_operand.hbm [shape: f32[1,256], index: 2, kind: input, shape index: {}]
  %s3 = inlined_call_operand.hbm [shape: bf16[256,256], index: 3, kind: input, shape index: {}]
  %s4 = inlined_call_operand.vmem [shape: f32[1,256], index: 4, kind: input, shape index: {}]
  %s5 = inlined_call_operand.hbm [shape: bf16[256,128], index: 5, kind: input, shape index: {}]
  %s6 = inlined_call_operand.vmem [shape: f32[1,128], index: 6, kind: input, shape index: {}]
  %s7 = inlined_call_operand.vmem [shape: f32[8,1], index: 7, kind: output, shape index: {}]
  %s8 = sld [smem:[#allocation0]]
  $region58: #{discriminator_forward.1} parent=0
    _
  %s10 = ssub.s32 1, %s8
  %s11 = scalar_select 0, %s10, %s8
  $region1: #{discriminator_forward.1} parent=0
    #allocation2 [shape = 'u8[28672]{0}', space=vmem, size = 0x7000, scoped, tag = 'input window, operand 0, single buffered']
    #allocation3 [shape = 's32[1]{0}', space=sflag, size = 0x4, scoped, tag = 'scoped memory for discriminator_forward.1']
    #allocation4 [shape = 'u8[401408]{0}', space=vmem, size = 0x62000, scoped, tag = 'input window, operand 1, single buffered']
    #allocation5 [shape = 's32[1]{0}', space=sflag, size = 0x4, scoped, tag = 'scoped memory for discriminator_forward.1']
    #allocation6 [shape = 'u8[1024]{0}', space=vmem, size = 0x400, scoped, tag = 'input window, operand 2, single buffered']
    #allocation7 [shape = 'u8[131072]{0}', space=vmem, size = 0x20000, scoped, tag = 'input window, operand 3, single buffered']
    #allocation8 [shape = 's32[1]{0}', space=sflag, size = 0x4, scoped, tag = 'scoped memory for discriminator_forward.1']
    #allocation9 [shape = 'u8[65536]{0}', space=vmem, size = 0x10000, scoped, tag = 'input window, operand 5, single buffered']
    %12 = vsyncpa [#allocation3], 0
    %13 = vsyncpa [#allocation5], 0
    %14 = vsyncpa [#allocation8], 0
    // Predicated region
    $region2: #{discriminator_forward.1} parent=1 // pred_check
      _
    $region3: #{discriminator_forward.1} parent=1 // pred_check_branch
      %16 = sbr.rel (0) target = $region5
    $region4: #{discriminator_forward.1} parent=1 // pred_region
      %s18 = ssub.s32 896, 896
      %19 = vsyncadd [#allocation3], %s18
      %s21 = sshll.u32 [#allocation2], 4
      %s22 = int_to_ptr.vmem [resolvable:$true] %s21
      %24 = dma.hbm_to_vmem [thread:$0]  %s0, 896, %s22, [#allocation3]
    $region5: #{discriminator_forward.1} parent=1 // pred_fallthru
      _
    // Predicated region
    $region6: #{discriminator_forward.1} parent=1 // pred_check
      _
    $region7: #{discriminator_forward.1} parent=1 // pred_check_branch
      %26 = sbr.rel (0) target = $region9
    $region8: #{discriminator_forward.1} parent=1 // pred_region
      %s28 = ssub.s32 12544, 12544
      %29 = vsyncadd [#allocation5], %s28
      %s30 = sshll.u32 [#allocation4], 4
      %s31 = int_to_ptr.vmem [resolvable:$true] %s30
      %36 = dma.hbm_to_vmem [thread:$0]  %s1, 12544, %s31, [#allocation5], 128, 128, 8
    $region9: #{discriminator_forward.1} parent=1 // pred_fallthru
      _
    // Predicated region
    $region10: #{discriminator_forward.1} parent=1 // pred_check
      _
    $region11: #{discriminator_forward.1} parent=1 // pred_check_branch
      %38 = sbr.rel (0) target = $region13
    $region12: #{discriminator_forward.1} parent=1 // pred_region
      %s40 = ssub.s32 32, 32
      %41 = vsyncadd [#allocation5], %s40
      %s43 = sshll.u32 [#allocation6], 4
      %s44 = int_to_ptr.vmem [resolvable:$true] %s43
      %46 = dma.hbm_to_vmem [thread:$0]  %s2, 32, %s44, [#allocation5]
    $region13: #{discriminator_forward.1} parent=1 // pred_fallthru
      _
    // Predicated region
    $region14: #{discriminator_forward.1} parent=1 // pred_check
      _
    $region15: #{discriminator_forward.1} parent=1 // pred_check_branch
      %48 = sbr.rel (0) target = $region17
    $region16: #{discriminator_forward.1} parent=1 // pred_region
      %s50 = ssub.s32 4096, 4096
      %51 = vsyncadd [#allocation8], %s50
      %s52 = sshll.u32 [#allocation7], 4
      %s53 = int_to_ptr.vmem [resolvable:$true] %s52
      %58 = dma.hbm_to_vmem [thread:$0]  %s3, 4096, %s53, [#allocation8], 128, 128, 8
    $region17: #{discriminator_forward.1} parent=1 // pred_fallthru
      _
    // Predicated region
    $region18: #{discriminator_forward.1} parent=1 // pred_check
      _
    $region19: #{discriminator_forward.1} parent=1 // pred_check_branch
      %60 = sbr.rel (0) target = $region21
    $region20: #{discriminator_forward.1} parent=1 // pred_region
      _
    $region21: #{discriminator_forward.1} parent=1 // pred_fallthru
      _
    // Predicated region
    $region22: #{discriminator_forward.1} parent=1 // pred_check
      _
    $region23: #{discriminator_forward.1} parent=1 // pred_check_branch
      %62 = sbr.rel (0) target = $region25
    $region24: #{discriminator_forward.1} parent=1 // pred_region
      %s64 = ssub.s32 2048, 2048
      %65 = vsyncadd [#allocation8], %s64
      %s66 = sshll.u32 [#allocation9], 4
      %s67 = int_to_ptr.vmem [resolvable:$true] %s66
      %72 = dma.hbm_to_vmem [thread:$0]  %s5, 2048, %s67, [#allocation8], 64, 64, 4
    $region25: #{discriminator_forward.1} parent=1 // pred_fallthru
      _
    // Predicated region
    $region26: #{discriminator_forward.1} parent=1 // pred_check
      _
    $region27: #{discriminator_forward.1} parent=1 // pred_check_branch
      %74 = sbr.rel (0) target = $region29
    $region28: #{discriminator_forward.1} parent=1 // pred_region
      _
    $region29: #{discriminator_forward.1} parent=1 // pred_fallthru
      _
    // Predicated region
    $region30: #{discriminator_forward.1} parent=1 // pred_check
      _
    $region31: #{discriminator_forward.1} parent=1 // pred_check_branch
      %76 = sbr.rel (0) target = $region33
    $region32: #{discriminator_forward.1} parent=1 // pred_region
      %77 = dma.done [#allocation3], 896
    $region33: #{discriminator_forward.1} parent=1 // pred_fallthru
      _
    // Predicated region
    $region34: #{discriminator_forward.1} parent=1 // pred_check
      _
    $region35: #{discriminator_forward.1} parent=1 // pred_check_branch
      %79 = sbr.rel (0) target = $region37
    $region36: #{discriminator_forward.1} parent=1 // pred_region
      %80 = dma.done [#allocation5], 12544
    $region37: #{discriminator_forward.1} parent=1 // pred_fallthru
      _
    // Predicated region
    $region38: #{discriminator_forward.1} parent=1 // pred_check
      _
    $region39: #{discriminator_forward.1} parent=1 // pred_check_branch
      %82 = sbr.rel (0) target = $region41
    $region40: #{discriminator_forward.1} parent=1 // pred_region
      %83 = dma.done [#allocation5], 32
    $region41: #{discriminator_forward.1} parent=1 // pred_fallthru
      _
    // Predicated region
    $region42: #{discriminator_forward.1} parent=1 // pred_check
      _
    $region43: #{discriminator_forward.1} parent=1 // pred_check_branch
      %85 = sbr.rel (0) target = $region45
    $region44: #{discriminator_forward.1} parent=1 // pred_region
      %86 = dma.done [#allocation8], 4096
    $region45: #{discriminator_forward.1} parent=1 // pred_fallthru
      _
    // Predicated region
    $region46: #{discriminator_forward.1} parent=1 // pred_check
      _
    $region47: #{discriminator_forward.1} parent=1 // pred_check_branch
      %88 = sbr.rel (0) target = $region49
    $region48: #{discriminator_forward.1} parent=1 // pred_region
      %89 = dma.done [#allocation8], 2048
    $region49: #{discriminator_forward.1} parent=1 // pred_fallthru
      _
    %v91 = vld [vmem:[#allocation2] sm:$0xff]
    %v92 = vld [vmem:[#allocation2 + $0x8] sm:$0xff]
    %v93 = vld [vmem:[#allocation2 + $0x10] sm:$0xff]
    %v94 = vld [vmem:[#allocation2 + $0x18] sm:$0xff]
    %v95 = vld [vmem:[#allocation2 + $0x20] sm:$0xff]
    %v96 = vld [vmem:[#allocation2 + $0x28] sm:$0xff]
    %v97 = vld [vmem:[#allocation2 + $0x30] sm:$0xff]
    %v98 = vpack.c.bf16 %v91, %v91
    %v99 = vpack.c.bf16 %v92, %v92
    %v100 = vpack.c.bf16 %v93, %v93
    %v101 = vpack.c.bf16 %v94, %v94
    %v102 = vpack.c.bf16 %v95, %v95
    %v103 = vpack.c.bf16 %v96, %v96
    %v104 = vpack.c.bf16 %v97, %v97
    %v105 = vld [vmem:[#allocation4] sm:$0xff]
    %v106 = vld [vmem:[#allocation4 + $0x8] sm:$0xff]
    %v107 = vld [vmem:[#allocation4 + $0x10] sm:$0xff]
    %v108 = vld [vmem:[#allocation4 + $0x18] sm:$0xff]
    %v109 = vld [vmem:[#allocation4 + $0x20] sm:$0xff]
    %v110 = vld [vmem:[#allocation4 + $0x28] sm:$0xff]
    %v111 = vld [vmem:[#allocation4 + $0x30] sm:$0xff]
    %v112 = vld [vmem:[#allocation4 + $0x38] sm:$0xff]
    %v113 = vld [vmem:[#allocation4 + $0x40] sm:$0xff]
    %v114 = vld [vmem:[#allocation4 + $0x48] sm:$0xff]
    %v115 = vld [vmem:[#allocation4 + $0x50] sm:$0xff]
    %v116 = vld [vmem:[#allocation4 + $0x58] sm:$0xff]
    %v117 = vld [vmem:[#allocation4 + $0x60] sm:$0xff]
    %v118 = vld [vmem:[#allocation4 + $0x68] sm:$0xff]
    %v119 = vld [vmem:[#allocation4 + $0x70] sm:$0xff]
    %v120 = vld [vmem:[#allocation4 + $0x78] sm:$0xff]
    %v121 = vld [vmem:[#allocation4 + $0x80] sm:$0xff]
    %v122 = vld [vmem:[#allocation4 + $0x88] sm:$0xff]
    %v123 = vld [vmem:[#allocation4 + $0x90] sm:$0xff]
    %v124 = vld [vmem:[#allocation4 + $0x98] sm:$0xff]
    %v125 = vld [vmem:[#allocation4 + $0xa0] sm:$0xff]
    %v126 = vld [vmem:[#allocation4 + $0xa8] sm:$0xff]
    %v127 = vld [vmem:[#allocation4 + $0xb0] sm:$0xff]
    %v128 = vld [vmem:[#allocation4 + $0xb8] sm:$0xff]
    %v129 = vld [vmem:[#allocation4 + $0xc0] sm:$0xff]
    %v130 = vld [vmem:[#allocation4 + $0xc8] sm:$0xff]
    %v131 = vld [vmem:[#allocation4 + $0xd0] sm:$0xff]
    %v132 = vld [vmem:[#allocation4 + $0xd8] sm:$0xff]
    %v133 = vld [vmem:[#allocation4 + $0xe0] sm:$0xff]
    %v134 = vld [vmem:[#allocation4 + $0xe8] sm:$0xff]
    %v135 = vld [vmem:[#allocation4 + $0xf0] sm:$0xff]
    %v136 = vld [vmem:[#allocation4 + $0xf8] sm:$0xff]
    %v137 = vld [vmem:[#allocation4 + $0x100] sm:$0xff]
    %v138 = vld [vmem:[#allocation4 + $0x108] sm:$0xff]
    %v139 = vld [vmem:[#allocation4 + $0x110] sm:$0xff]
    %v140 = vld [vmem:[#allocation4 + $0x118] sm:$0xff]
    %v141 = vld [vmem:[#allocation4 + $0x120] sm:$0xff]
    %v142 = vld [vmem:[#allocation4 + $0x128] sm:$0xff]
    %v143 = vld [vmem:[#allocation4 + $0x130] sm:$0xff]
    %v144 = vld [vmem:[#allocation4 + $0x138] sm:$0xff]
    %v145 = vld [vmem:[#allocation4 + $0x140] sm:$0xff]
    %v146 = vld [vmem:[#allocation4 + $0x148] sm:$0xff]
    %v147 = vld [vmem:[#allocation4 + $0x150] sm:$0xff]
    %v148 = vld [vmem:[#allocation4 + $0x158] sm:$0xff]
    %v149 = vld [vmem:[#allocation4 + $0x160] sm:$0xff]
    %v150 = vld [vmem:[#allocation4 + $0x168] sm:$0xff]
    %v151 = vld [vmem:[#allocation4 + $0x170] sm:$0xff]
    %v152 = vld [vmem:[#allocation4 + $0x178] sm:$0xff]
    %v153 = vld [vmem:[#allocation4 + $0x180] sm:$0xff]
    %v154 = vld [vmem:[#allocation4 + $0x188] sm:$0xff]
    %v155 = vld [vmem:[#allocation4 + $0x190] sm:$0xff]
    %v156 = vld [vmem:[#allocation4 + $0x198] sm:$0xff]
    %v157 = vld [vmem:[#allocation4 + $0x1a0] sm:$0xff]
    %v158 = vld [vmem:[#allocation4 + $0x1a8] sm:$0xff]
    %v159 = vld [vmem:[#allocation4 + $0x1b0] sm:$0xff]
    %v160 = vld [vmem:[#allocation4 + $0x1b8] sm:$0xff]
    %v161 = vld [vmem:[#allocation4 + $0x1c0] sm:$0xff]
    %v162 = vld [vmem:[#allocation4 + $0x1c8] sm:$0xff]
    %v163 = vld [vmem:[#allocation4 + $0x1d0] sm:$0xff]
    %v164 = vld [vmem:[#allocation4 + $0x1d8] sm:$0xff]
    %v165 = vld [vmem:[#allocation4 + $0x1e0] sm:$0xff]
    %v166 = vld [vmem:[#allocation4 + $0x1e8] sm:$0xff]
    %v167 = vld [vmem:[#allocation4 + $0x1f0] sm:$0xff]
    %v168 = vld [vmem:[#allocation4 + $0x1f8] sm:$0xff]
    %v169 = vld [vmem:[#allocation4 + $0x200] sm:$0xff]
    %v170 = vld [vmem:[#allocation4 + $0x208] sm:$0xff]
    %v171 = vld [vmem:[#allocation4 + $0x210] sm:$0xff]
    %v172 = vld [vmem:[#allocation4 + $0x218] sm:$0xff]
    %v173 = vld [vmem:[#allocation4 + $0x220] sm:$0xff]
    %v174 = vld [vmem:[#allocation4 + $0x228] sm:$0xff]
    %v175 = vld [vmem:[#allocation4 + $0x230] sm:$0xff]
    %v176 = vld [vmem:[#allocation4 + $0x238] sm:$0xff]
    %v177 = vld [vmem:[#allocation4 + $0x240] sm:$0xff]
    %v178 = vld [vmem:[#allocation4 + $0x248] sm:$0xff]
    %v179 = vld [vmem:[#allocation4 + $0x250] sm:$0xff]
    %v180 = vld [vmem:[#allocation4 + $0x258] sm:$0xff]
    %v181 = vld [vmem:[#allocation4 + $0x260] sm:$0xff]
    %v182 = vld [vmem:[#allocation4 + $0x268] sm:$0xff]
    %v183 = vld [vmem:[#allocation4 + $0x270] sm:$0xff]
    %v184 = vld [vmem:[#allocation4 + $0x278] sm:$0xff]
    %v185 = vld [vmem:[#allocation4 + $0x280] sm:$0xff]
    %v186 = vld [vmem:[#allocation4 + $0x288] sm:$0xff]
    %v187 = vld [vmem:[#allocation4 + $0x290] sm:$0xff]
    %v188 = vld [vmem:[#allocation4 + $0x298] sm:$0xff]
    %v189 = vld [vmem:[#allocation4 + $0x2a0] sm:$0xff]
    %v190 = vld [vmem:[#allocation4 + $0x2a8] sm:$0xff]
    %v191 = vld [vmem:[#allocation4 + $0x2b0] sm:$0xff]
    %v192 = vld [vmem:[#allocation4 + $0x2b8] sm:$0xff]
    %v193 = vld [vmem:[#allocation4 + $0x2c0] sm:$0xff]
    %v194 = vld [vmem:[#allocation4 + $0x2c8] sm:$0xff]
    %v195 = vld [vmem:[#allocation4 + $0x2d0] sm:$0xff]
    %v196 = vld [vmem:[#allocation4 + $0x2d8] sm:$0xff]
    %v197 = vld [vmem:[#allocation4 + $0x2e0] sm:$0xff]
    %v198 = vld [vmem:[#allocation4 + $0x2e8] sm:$0xff]
    %v199 = vld [vmem:[#allocation4 + $0x2f0] sm:$0xff]
    %v200 = vld [vmem:[#allocation4 + $0x2f8] sm:$0xff]
    %v201 = vld [vmem:[#allocation4 + $0x300] sm:$0xff]
    %v202 = vld [vmem:[#allocation4 + $0x308] sm:$0xff]
    %v203 = vld [vmem:[#allocation6] sm:$0x3]
    %v205 = vlaneseq
    %v206 = vshrl.u32 %v205, 7
    %v207 = vsub.s32 0, %v206
    %v208 = vrot.slane %v203, %v207
    %v209 = vlaneseq
    %v210 = vshrl.u32 %v209, 7
    %v211 = vsub.s32 1, %v210
    %v212 = vrot.slane %v203, %v211
    %v313 = vunpack.c.l.b16 %v105
    %v314 = vunpack.c.h.b16 %v105
    %v315 = vunpack.c.l.b16 %v106
    %v316 = vunpack.c.h.b16 %v106
    %v317 = vunpack.c.l.b16 %v107
    %v318 = vunpack.c.h.b16 %v107
    %v319 = vunpack.c.l.b16 %v108
    %v320 = vunpack.c.h.b16 %v108
    %v321 = vunpack.c.l.b16 %v109
    %v322 = vunpack.c.h.b16 %v109
    %v323 = vunpack.c.l.b16 %v110
    %v324 = vunpack.c.h.b16 %v110
    %v325 = vunpack.c.l.b16 %v111
    %v326 = vunpack.c.h.b16 %v111
    %v327 = vunpack.c.l.b16 %v112
    %v328 = vunpack.c.h.b16 %v112
    %v329 = vunpack.c.l.b16 %v113
    %v330 = vunpack.c.h.b16 %v113
    %v331 = vunpack.c.l.b16 %v114
    %v332 = vunpack.c.h.b16 %v114
    %v333 = vunpack.c.l.b16 %v115
    %v334 = vunpack.c.h.b16 %v115
    %v335 = vunpack.c.l.b16 %v116
    %v336 = vunpack.c.h.b16 %v116
    %v337 = vunpack.c.l.b16 %v117
    %v338 = vunpack.c.h.b16 %v117
    %v339 = vunpack.c.l.b16 %v118
    %v340 = vunpack.c.h.b16 %v118
    %v341 = vunpack.c.l.b16 %v119
    %v342 = vunpack.c.h.b16 %v119
    %v343 = vunpack.c.l.b16 %v120
    %v344 = vunpack.c.h.b16 %v120
    %v345 = vunpack.c.l.b16 %v121
    %v346 = vunpack.c.h.b16 %v121
    %v347 = vunpack.c.l.b16 %v122
    %v348 = vunpack.c.h.b16 %v122
    %v349 = vunpack.c.l.b16 %v123
    %v350 = vunpack.c.h.b16 %v123
    %v351 = vunpack.c.l.b16 %v124
    %v352 = vunpack.c.h.b16 %v124
    %v353 = vunpack.c.l.b16 %v125
    %v354 = vunpack.c.h.b16 %v125
    %v355 = vunpack.c.l.b16 %v126
    %v356 = vunpack.c.h.b16 %v126
    %v357 = vunpack.c.l.b16 %v127
    %v358 = vunpack.c.h.b16 %v127
    %v359 = vunpack.c.l.b16 %v128
    %v360 = vunpack.c.h.b16 %v128
    %v361 = vunpack.c.l.b16 %v129
    %v362 = vunpack.c.h.b16 %v129
    %v363 = vunpack.c.l.b16 %v130
    %v364 = vunpack.c.h.b16 %v130
    %v365 = vunpack.c.l.b16 %v131
    %v366 = vunpack.c.h.b16 %v131
    %v367 = vunpack.c.l.b16 %v132
    %v368 = vunpack.c.h.b16 %v132
    %v369 = vunpack.c.l.b16 %v133
    %v370 = vunpack.c.h.b16 %v133
    %v371 = vunpack.c.l.b16 %v134
    %v372 = vunpack.c.h.b16 %v134
    %v373 = vunpack.c.l.b16 %v135
    %v374 = vunpack.c.h.b16 %v135
    %v375 = vunpack.c.l.b16 %v136
    %v376 = vunpack.c.h.b16 %v136
    %v377 = vunpack.c.l.b16 %v137
    %v378 = vunpack.c.h.b16 %v137
    %v379 = vunpack.c.l.b16 %v138
    %v380 = vunpack.c.h.b16 %v138
    %v381 = vunpack.c.l.b16 %v139
    %v382 = vunpack.c.h.b16 %v139
    %v383 = vunpack.c.l.b16 %v140
    %v384 = vunpack.c.h.b16 %v140
    %v385 = vunpack.c.l.b16 %v141
    %v386 = vunpack.c.h.b16 %v141
    %v387 = vunpack.c.l.b16 %v142
    %v388 = vunpack.c.h.b16 %v142
    %v389 = vunpack.c.l.b16 %v143
    %v390 = vunpack.c.h.b16 %v143
    %v391 = vunpack.c.l.b16 %v144
    %v392 = vunpack.c.h.b16 %v144
    %v393 = vunpack.c.l.b16 %v145
    %v394 = vunpack.c.h.b16 %v145
    %v395 = vunpack.c.l.b16 %v146
    %v396 = vunpack.c.h.b16 %v146
    %v397 = vunpack.c.l.b16 %v147
    %v398 = vunpack.c.h.b16 %v147
    %v399 = vunpack.c.l.b16 %v148
    %v400 = vunpack.c.h.b16 %v148
    %v401 = vunpack.c.l.b16 %v149
    %v402 = vunpack.c.h.b16 %v149
    %v403 = vunpack.c.l.b16 %v150
    %v404 = vunpack.c.h.b16 %v150
    %v405 = vunpack.c.l.b16 %v151
    %v406 = vunpack.c.h.b16 %v151
    %v407 = vunpack.c.l.b16 %v152
    %v408 = vunpack.c.h.b16 %v152
    %v409 = vunpack.c.l.b16 %v153
    %v410 = vunpack.c.h.b16 %v153
    %v411 = vunpack.c.l.b16 %v154
    %v412 = vunpack.c.h.b16 %v154
    %v413 = vunpack.c.l.b16 %v155
    %v414 = vunpack.c.h.b16 %v155
    %v415 = vunpack.c.l.b16 %v156
    %v416 = vunpack.c.h.b16 %v156
    %v417 = vunpack.c.l.b16 %v157
    %v418 = vunpack.c.h.b16 %v157
    %v419 = vunpack.c.l.b16 %v158
    %v420 = vunpack.c.h.b16 %v158
    %v421 = vunpack.c.l.b16 %v159
    %v422 = vunpack.c.h.b16 %v159
    %v423 = vunpack.c.l.b16 %v160
    %v424 = vunpack.c.h.b16 %v160
    %v425 = vunpack.c.l.b16 %v161
    %v426 = vunpack.c.h.b16 %v161
    %v427 = vunpack.c.l.b16 %v162
    %v428 = vunpack.c.h.b16 %v162
    %v429 = vunpack.c.l.b16 %v163
    %v430 = vunpack.c.h.b16 %v163
    %v431 = vunpack.c.l.b16 %v164
    %v432 = vunpack.c.h.b16 %v164
    %v433 = vunpack.c.l.b16 %v165
    %v434 = vunpack.c.h.b16 %v165
    %v435 = vunpack.c.l.b16 %v166
    %v436 = vunpack.c.h.b16 %v166
    %v437 = vunpack.c.l.b16 %v167
    %v438 = vunpack.c.h.b16 %v167
    %v439 = vunpack.c.l.b16 %v168
    %v440 = vunpack.c.h.b16 %v168
    %v441 = vunpack.c.l.b16 %v169
    %v442 = vunpack.c.h.b16 %v169
    %v443 = vunpack.c.l.b16 %v170
    %v444 = vunpack.c.h.b16 %v170
    %v445 = vunpack.c.l.b16 %v171
    %v446 = vunpack.c.h.b16 %v171
    %v447 = vunpack.c.l.b16 %v172
    %v448 = vunpack.c.h.b16 %v172
    %v449 = vunpack.c.l.b16 %v173
    %v450 = vunpack.c.h.b16 %v173
    %v451 = vunpack.c.l.b16 %v174
    %v452 = vunpack.c.h.b16 %v174
    %v453 = vunpack.c.l.b16 %v175
    %v454 = vunpack.c.h.b16 %v175
    %v455 = vunpack.c.l.b16 %v176
    %v456 = vunpack.c.h.b16 %v176
    %v457 = vunpack.c.l.b16 %v177
    %v458 = vunpack.c.h.b16 %v177
    %v459 = vunpack.c.l.b16 %v178
    %v460 = vunpack.c.h.b16 %v178
    %v461 = vunpack.c.l.b16 %v179
    %v462 = vunpack.c.h.b16 %v179
    %v463 = vunpack.c.l.b16 %v180
    %v464 = vunpack.c.h.b16 %v180
    %v465 = vunpack.c.l.b16 %v181
    %v466 = vunpack.c.h.b16 %v181
    %v467 = vunpack.c.l.b16 %v182
    %v468 = vunpack.c.h.b16 %v182
    %v469 = vunpack.c.l.b16 %v183
    %v470 = vunpack.c.h.b16 %v183
    %v471 = vunpack.c.l.b16 %v184
    %v472 = vunpack.c.h.b16 %v184
    %v473 = vunpack.c.l.b16 %v185
    %v474 = vunpack.c.h.b16 %v185
    %v475 = vunpack.c.l.b16 %v186
    %v476 = vunpack.c.h.b16 %v186
    %v477 = vunpack.c.l.b16 %v187
    %v478 = vunpack.c.h.b16 %v187
    %v479 = vunpack.c.l.b16 %v188
    %v480 = vunpack.c.h.b16 %v188
    %v481 = vunpack.c.l.b16 %v189
    %v482 = vunpack.c.h.b16 %v189
    %v483 = vunpack.c.l.b16 %v190
    %v484 = vunpack.c.h.b16 %v190
    %v485 = vunpack.c.l.b16 %v191
    %v486 = vunpack.c.h.b16 %v191
    %v487 = vunpack.c.l.b16 %v192
    %v488 = vunpack.c.h.b16 %v192
    %v489 = vunpack.c.l.b16 %v193
    %v490 = vunpack.c.h.b16 %v193
    %v491 = vunpack.c.l.b16 %v194
    %v492 = vunpack.c.h.b16 %v194
    %v493 = vunpack.c.l.b16 %v195
    %v494 = vunpack.c.h.b16 %v195
    %v495 = vunpack.c.l.b16 %v196
    %v496 = vunpack.c.h.b16 %v196
    %v497 = vunpack.c.l.b16 %v197
    %v498 = vunpack.c.h.b16 %v197
    %v499 = vunpack.c.l.b16 %v198
    %v500 = vunpack.c.h.b16 %v198
    %v501 = vunpack.c.l.b16 %v199
    %v502 = vunpack.c.h.b16 %v199
    %v503 = vunpack.c.l.b16 %v200
    %v504 = vunpack.c.h.b16 %v200
    %v505 = vunpack.c.l.b16 %v201
    %v506 = vunpack.c.h.b16 %v201
    %v507 = vunpack.c.l.b16 %v202
    %v508 = vunpack.c.h.b16 %v202
    %v509 = vpack.c.b16 %v315, %v313
    %v510 = vpack.c.b16 %v316, %v314
    %v511 = vpack.c.b16 %v319, %v317
    %v512 = vpack.c.b16 %v320, %v318
    %v513 = vpack.c.b16 %v323, %v321
    %v514 = vpack.c.b16 %v324, %v322
    %v515 = vpack.c.b16 %v327, %v325
    %v516 = vpack.c.b16 %v328, %v326
    %v517 = vpack.c.b16 %v331, %v329
    %v518 = vpack.c.b16 %v332, %v330
    %v519 = vpack.c.b16 %v335, %v333
    %v520 = vpack.c.b16 %v336, %v334
    %v521 = vpack.c.b16 %v339, %v337
    %v522 = vpack.c.b16 %v340, %v338
    %v523 = vpack.c.b16 %v343, %v341
    %v524 = vpack.c.b16 %v344, %v342
    %v525 = vpack.c.b16 %v347, %v345
    %v526 = vpack.c.b16 %v348, %v346
    %v527 = vpack.c.b16 %v351, %v349
    %v528 = vpack.c.b16 %v352, %v350
    %v529 = vpack.c.b16 %v355, %v353
    %v530 = vpack.c.b16 %v356, %v354
    %v531 = vpack.c.b16 %v359, %v357
    %v532 = vpack.c.b16 %v360, %v358
    %v533 = vpack.c.b16 %v363, %v361
    %v534 = vpack.c.b16 %v364, %v362
    %v535 = vpack.c.b16 %v367, %v365
    %v536 = vpack.c.b16 %v368, %v366
    %v537 = vpack.c.b16 %v371, %v369
    %v538 = vpack.c.b16 %v372, %v370
    %v539 = vpack.c.b16 %v375, %v373
    %v540 = vpack.c.b16 %v376, %v374
    %v541 = vpack.c.b16 %v379, %v377
    %v542 = vpack.c.b16 %v380, %v378
    %v543 = vpack.c.b16 %v383, %v381
    %v544 = vpack.c.b16 %v384, %v382
    %v545 = vpack.c.b16 %v387, %v385
    %v546 = vpack.c.b16 %v388, %v386
    %v547 = vpack.c.b16 %v391, %v389
    %v548 = vpack.c.b16 %v392, %v390
    %v549 = vpack.c.b16 %v395, %v393
    %v550 = vpack.c.b16 %v396, %v394
    %v551 = vpack.c.b16 %v399, %v397
    %v552 = vpack.c.b16 %v400, %v398
    %v553 = vpack.c.b16 %v403, %v401
    %v554 = vpack.c.b16 %v404, %v402
    %v555 = vpack.c.b16 %v407, %v405
    %v556 = vpack.c.b16 %v408, %v406
    %v557 = vpack.c.b16 %v411, %v409
    %v558 = vpack.c.b16 %v412, %v410
    %v559 = vpack.c.b16 %v415, %v413
    %v560 = vpack.c.b16 %v416, %v414
    %v561 = vpack.c.b16 %v419, %v417
    %v562 = vpack.c.b16 %v420, %v418
    %v563 = vpack.c.b16 %v423, %v421
    %v564 = vpack.c.b16 %v424, %v422
    %v565 = vpack.c.b16 %v427, %v425
    %v566 = vpack.c.b16 %v428, %v426
    %v567 = vpack.c.b16 %v431, %v429
    %v568 = vpack.c.b16 %v432, %v430
    %v569 = vpack.c.b16 %v435, %v433
    %v570 = vpack.c.b16 %v436, %v434
    %v571 = vpack.c.b16 %v439, %v437
    %v572 = vpack.c.b16 %v440, %v438
    %v573 = vpack.c.b16 %v443, %v441
    %v574 = vpack.c.b16 %v444, %v442
    %v575 = vpack.c.b16 %v447, %v445
    %v576 = vpack.c.b16 %v448, %v446
    %v577 = vpack.c.b16 %v451, %v449
    %v578 = vpack.c.b16 %v452, %v450
    %v579 = vpack.c.b16 %v455, %v453
    %v580 = vpack.c.b16 %v456, %v454
    %v581 = vpack.c.b16 %v459, %v457
    %v582 = vpack.c.b16 %v460, %v458
    %v583 = vpack.c.b16 %v463, %v461
    %v584 = vpack.c.b16 %v464, %v462
    %v585 = vpack.c.b16 %v467, %v465
    %v586 = vpack.c.b16 %v468, %v466
    %v587 = vpack.c.b16 %v471, %v469
    %v588 = vpack.c.b16 %v472, %v470
    %v589 = vpack.c.b16 %v475, %v473
    %v590 = vpack.c.b16 %v476, %v474
    %v591 = vpack.c.b16 %v479, %v477
    %v592 = vpack.c.b16 %v480, %v478
    %v593 = vpack.c.b16 %v483, %v481
    %v594 = vpack.c.b16 %v484, %v482
    %v595 = vpack.c.b16 %v487, %v485
    %v596 = vpack.c.b16 %v488, %v486
    %v597 = vpack.c.b16 %v491, %v489
    %v598 = vpack.c.b16 %v492, %v490
    %v599 = vpack.c.b16 %v495, %v493
    %v600 = vpack.c.b16 %v496, %v494
    %v601 = vpack.c.b16 %v499, %v497
    %v602 = vpack.c.b16 %v500, %v498
    %v603 = vpack.c.b16 %v503, %v501
    %v604 = vpack.c.b16 %v504, %v502
    %v605 = vpack.c.b16 %v507, %v505
    %v606 = vpack.c.b16 %v508, %v506
    %vm705 = vcmask 130048
    %v707 = vsel %vm705, %v104, 0
    %709 = vmatprep.subr.bf16.mxu0 %v524
    %710 = vmatpush1.bf16.msra.mxu0 %v523
    %711 = vmatprep.subr.bf16.mxu0 %v522
    %712 = vmatpush1.bf16.msra.mxu0 %v521
    %713 = vmatprep.subr.bf16.mxu0 %v520
    %714 = vmatpush1.bf16.msra.mxu0 %v519
    %715 = vmatprep.subr.bf16.mxu0 %v518
    %716 = vmatpush1.bf16.msra.mxu0 %v517
    %717 = vmatprep.subr.bf16.mxu0 %v516
    %718 = vmatpush1.bf16.msra.mxu0 %v515
    %719 = vmatprep.subr.bf16.mxu0 %v514
    %720 = vmatpush1.bf16.msra.mxu0 %v513
    %721 = vmatprep.subr.bf16.mxu0 %v512
    %722 = vmatpush1.bf16.msra.mxu0 %v511
    %723 = vmatprep.subr.bf16.mxu0 %v510
    %724 = vmatpush1.bf16.msra.mxu0 %v509
    %725 = vmatprep.subr.bf16.mxu0 %v540
    %726 = vmatpush2.bf16.msra.mxu0 %v539
    %727 = vmatprep.subr.bf16.mxu0 %v538
    %728 = vmatpush2.bf16.msra.mxu0 %v537
    %729 = vmatprep.subr.bf16.mxu0 %v536
    %730 = vmatpush2.bf16.msra.mxu0 %v535
    %731 = vmatprep.subr.bf16.mxu0 %v534
    %732 = vmatpush2.bf16.msra.mxu0 %v533
    %733 = vmatprep.subr.bf16.mxu0 %v532
    %734 = vmatpush2.bf16.msra.mxu0 %v531
    %735 = vmatprep.subr.bf16.mxu0 %v530
    %736 = vmatpush2.bf16.msra.mxu0 %v529
    %737 = vmatprep.subr.bf16.mxu0 %v528
    %738 = vmatpush2.bf16.msra.mxu0 %v527
    %739 = vmatprep.subr.bf16.mxu0 %v526
    %740 = vmatpush2.bf16.msra.mxu0 %v525
    %741 = vmatprep.mubr.bf16.mxu0 %v99
    %742 = vmatmul.mubr.bf16.gmra.mxu0 %v98
    %v743 = vpop.f32.mrf.mxu0
    %v744 = vadd.f32 %v208, %v743
    %v745 = vpop.f32.mrf.mxu0
    %v746 = vadd.f32 %v212, %v745
    %v747 = vpop.f32.mrf.mxu0
    %v748 = vpop.f32.mrf.mxu0
    %749 = vdwg.mxu0
    %750 = vmatprep.subr.bf16.mxu0 %v556
    %751 = vmatpush1.bf16.msra.mxu0 %v555
    %752 = vmatprep.subr.bf16.mxu0 %v554
    %753 = vmatpush1.bf16.msra.mxu0 %v553
    %754 = vmatprep.subr.bf16.mxu0 %v552
    %755 = vmatpush1.bf16.msra.mxu0 %v551
    %756 = vmatprep.subr.bf16.mxu0 %v550
    %757 = vmatpush1.bf16.msra.mxu0 %v549
    %758 = vmatprep.subr.bf16.mxu0 %v548
    %759 = vmatpush1.bf16.msra.mxu0 %v547
    %760 = vmatprep.subr.bf16.mxu0 %v546
    %761 = vmatpush1.bf16.msra.mxu0 %v545
    %762 = vmatprep.subr.bf16.mxu0 %v544
    %763 = vmatpush1.bf16.msra.mxu0 %v543
    %764 = vmatprep.subr.bf16.mxu0 %v542
    %765 = vmatpush1.bf16.msra.mxu0 %v541
    %766 = vmatprep.subr.bf16.mxu0 %v572
    %767 = vmatpush2.bf16.msra.mxu0 %v571
    %768 = vmatprep.subr.bf16.mxu0 %v570
    %769 = vmatpush2.bf16.msra.mxu0 %v569
    %770 = vmatprep.subr.bf16.mxu0 %v568
    %771 = vmatpush2.bf16.msra.mxu0 %v567
    %772 = vmatprep.subr.bf16.mxu0 %v566
    %773 = vmatpush2.bf16.msra.mxu0 %v565
    %774 = vmatprep.subr.bf16.mxu0 %v564
    %775 = vmatpush2.bf16.msra.mxu0 %v563
    %776 = vmatprep.subr.bf16.mxu0 %v562
    %777 = vmatpush2.bf16.msra.mxu0 %v561
    %778 = vmatprep.subr.bf16.mxu0 %v560
    %779 = vmatpush2.bf16.msra.mxu0 %v559
    %780 = vmatprep.subr.bf16.mxu0 %v558
    %781 = vmatpush2.bf16.msra.mxu0 %v557
    %782 = vmatprep.mubr.bf16.mxu0 %v101
    %783 = vmatmul.mubr.bf16.gmra.mxu0 %v100
    %v784 = vpop.f32.mrf.mxu0
    %v785 = vadd.f32 %v744, %v784
    %v786 = vpop.f32.mrf.mxu0
    %v787 = vadd.f32 %v746, %v786
    %v788 = vpop.f32.mrf.mxu0
    %v789 = vpop.f32.mrf.mxu0
    %790 = vdwg.mxu0
    %791 = vmatprep.subr.bf16.mxu0 %v588
    %792 = vmatpush1.bf16.msra.mxu0 %v587
    %793 = vmatprep.subr.bf16.mxu0 %v586
    %794 = vmatpush1.bf16.msra.mxu0 %v585
    %795 = vmatprep.subr.bf16.mxu0 %v584
    %796 = vmatpush1.bf16.msra.mxu0 %v583
    %797 = vmatprep.subr.bf16.mxu0 %v582
    %798 = vmatpush1.bf16.msra.mxu0 %v581
    %799 = vmatprep.subr.bf16.mxu0 %v580
    %800 = vmatpush1.bf16.msra.mxu0 %v579
    %801 = vmatprep.subr.bf16.mxu0 %v578
    %802 = vmatpush1.bf16.msra.mxu0 %v577
    %803 = vmatprep.subr.bf16.mxu0 %v576
    %804 = vmatpush1.bf16.msra.mxu0 %v575
    %805 = vmatprep.subr.bf16.mxu0 %v574
    %806 = vmatpush1.bf16.msra.mxu0 %v573
    %807 = vmatprep.subr.bf16.mxu0 %v604
    %808 = vmatpush2.bf16.msra.mxu0 %v603
    %809 = vmatprep.subr.bf16.mxu0 %v602
    %810 = vmatpush2.bf16.msra.mxu0 %v601
    %811 = vmatprep.subr.bf16.mxu0 %v600
    %812 = vmatpush2.bf16.msra.mxu0 %v599
    %813 = vmatprep.subr.bf16.mxu0 %v598
    %814 = vmatpush2.bf16.msra.mxu0 %v597
    %815 = vmatprep.subr.bf16.mxu0 %v596
    %816 = vmatpush2.bf16.msra.mxu0 %v595
    %817 = vmatprep.subr.bf16.mxu0 %v594
    %818 = vmatpush2.bf16.msra.mxu0 %v593
    %819 = vmatprep.subr.bf16.mxu0 %v592
    %820 = vmatpush2.bf16.msra.mxu0 %v591
    %821 = vmatprep.subr.bf16.mxu0 %v590
    %822 = vmatpush2.bf16.msra.mxu0 %v589
    %823 = vmatprep.mubr.bf16.mxu0 %v103
    %824 = vmatmul.mubr.bf16.gmra.mxu0 %v102
    %v825 = vpop.f32.mrf.mxu0
    %v826 = vadd.f32 %v785, %v825
    %v827 = vpop.f32.mrf.mxu0
    %v828 = vadd.f32 %v787, %v827
    %v829 = vpop.f32.mrf.mxu0
    %v830 = vpop.f32.mrf.mxu0
    %831 = vdwg.mxu0
    %832 = vmatprep.subr.bf16.mxu0 0
    %833 = vmatpush1.bf16.msra.mxu0 0
    %834 = vmatprep.subr.bf16.mxu0 0
    %835 = vmatpush1.bf16.msra.mxu0 0
    %836 = vmatprep.subr.bf16.mxu0 0
    %837 = vmatpush1.bf16.msra.mxu0 0
    %838 = vmatprep.subr.bf16.mxu0 0
    %839 = vmatpush1.bf16.msra.mxu0 0
    %840 = vmatprep.subr.bf16.mxu0 0
    %841 = vmatpush1.bf16.msra.mxu0 0
    %842 = vmatprep.subr.bf16.mxu0 0
    %843 = vmatpush1.bf16.msra.mxu0 0
    %844 = vmatprep.subr.bf16.mxu0 0
    %845 = vmatpush1.bf16.msra.mxu0 0
    %846 = vmatprep.subr.bf16.mxu0 %v606
    %847 = vmatpush1.bf16.msra.mxu0 %v605
    %848 = vmatprep.subr.bf16.mxu0 0
    %849 = vmatpush2.bf16.msra.mxu0 0
    %850 = vmatprep.subr.bf16.mxu0 0
    %851 = vmatpush2.bf16.msra.mxu0 0
    %852 = vmatprep.subr.bf16.mxu0 0
    %853 = vmatpush2.bf16.msra.mxu0 0
    %854 = vmatprep.subr.bf16.mxu0 0
    %855 = vmatpush2.bf16.msra.mxu0 0
    %856 = vmatprep.subr.bf16.mxu0 0
    %857 = vmatpush2.bf16.msra.mxu0 0
    %858 = vmatprep.subr.bf16.mxu0 0
    %859 = vmatpush2.bf16.msra.mxu0 0
    %860 = vmatprep.subr.bf16.mxu0 0
    %861 = vmatpush2.bf16.msra.mxu0 0
    %862 = vmatprep.subr.bf16.mxu0 0
    %863 = vmatpush2.bf16.msra.mxu0 0
    %864 = vmatprep.mubr.bf16.mxu0 0
    %865 = vmatmul.mubr.bf16.gmra.mxu0 %v707
    %v866 = vpop.f32.mrf.mxu0
    %v867 = vadd.f32 %v826, %v866
    %v868 = vpop.f32.mrf.mxu0
    %v869 = vadd.f32 %v828, %v868
    %v870 = vpop.f32.mrf.mxu0
    %v871 = vpop.f32.mrf.mxu0
    %872 = vdwg.mxu0
    %vm873 = vcmp.gt.f32.partialorder %v867, 0.0
    %vm874 = vcmp.gt.f32.partialorder %v869, 0.0
    %v875 = vmul.f32 %v867, 0.2
    %v876 = vmul.f32 %v869, 0.2
    %v877 = vsel %vm873, %v867, %v875
    %v878 = vsel %vm874, %v869, %v876
    %v879 = vpack.c.bf16 %v877, %v877
    %v880 = vpack.c.bf16 %v878, %v878
    %v881 = vld [vmem:[#allocation7] sm:$0xff]
    %v882 = vld [vmem:[#allocation7 + $0x8] sm:$0xff]
    %v883 = vld [vmem:[#allocation7 + $0x10] sm:$0xff]
    %v884 = vld [vmem:[#allocation7 + $0x18] sm:$0xff]
    %v885 = vld [vmem:[#allocation7 + $0x20] sm:$0xff]
    %v886 = vld [vmem:[#allocation7 + $0x28] sm:$0xff]
    %v887 = vld [vmem:[#allocation7 + $0x30] sm:$0xff]
    %v888 = vld [vmem:[#allocation7 + $0x38] sm:$0xff]
    %v889 = vld [vmem:[#allocation7 + $0x40] sm:$0xff]
    %v890 = vld [vmem:[#allocation7 + $0x48] sm:$0xff]
    %v891 = vld [vmem:[#allocation7 + $0x50] sm:$0xff]
    %v892 = vld [vmem:[#allocation7 + $0x58] sm:$0xff]
    %v893 = vld [vmem:[#allocation7 + $0x60] sm:$0xff]
    %v894 = vld [vmem:[#allocation7 + $0x68] sm:$0xff]
    %v895 = vld [vmem:[#allocation7 + $0x70] sm:$0xff]
    %v896 = vld [vmem:[#allocation7 + $0x78] sm:$0xff]
    %v897 = vld [vmem:[#allocation7 + $0x80] sm:$0xff]
    %v898 = vld [vmem:[#allocation7 + $0x88] sm:$0xff]
    %v899 = vld [vmem:[#allocation7 + $0x90] sm:$0xff]
    %v900 = vld [vmem:[#allocation7 + $0x98] sm:$0xff]
    %v901 = vld [vmem:[#allocation7 + $0xa0] sm:$0xff]
    %v902 = vld [vmem:[#allocation7 + $0xa8] sm:$0xff]
    %v903 = vld [vmem:[#allocation7 + $0xb0] sm:$0xff]
    %v904 = vld [vmem:[#allocation7 + $0xb8] sm:$0xff]
    %v905 = vld [vmem:[#allocation7 + $0xc0] sm:$0xff]
    %v906 = vld [vmem:[#allocation7 + $0xc8] sm:$0xff]
    %v907 = vld [vmem:[#allocation7 + $0xd0] sm:$0xff]
    %v908 = vld [vmem:[#allocation7 + $0xd8] sm:$0xff]
    %v909 = vld [vmem:[#allocation7 + $0xe0] sm:$0xff]
    %v910 = vld [vmem:[#allocation7 + $0xe8] sm:$0xff]
    %v911 = vld [vmem:[#allocation7 + $0xf0] sm:$0xff]
    %v912 = vld [vmem:[#allocation7 + $0xf8] sm:$0xff]
    %v913 = vld [vmem:[%s4] sm:$0x3]
    %v915 = vlaneseq
    %v916 = vshrl.u32 %v915, 7
    %v917 = vsub.s32 0, %v916
    %v918 = vrot.slane %v913, %v917
    %v919 = vlaneseq
    %v920 = vshrl.u32 %v919, 7
    %v921 = vsub.s32 1, %v920
    %v922 = vrot.slane %v913, %v921
    %v957 = vunpack.c.l.b16 %v881
    %v958 = vunpack.c.h.b16 %v881
    %v959 = vunpack.c.l.b16 %v882
    %v960 = vunpack.c.h.b16 %v882
    %v961 = vunpack.c.l.b16 %v883
    %v962 = vunpack.c.h.b16 %v883
    %v963 = vunpack.c.l.b16 %v884
    %v964 = vunpack.c.h.b16 %v884
    %v965 = vunpack.c.l.b16 %v885
    %v966 = vunpack.c.h.b16 %v885
    %v967 = vunpack.c.l.b16 %v886
    %v968 = vunpack.c.h.b16 %v886
    %v969 = vunpack.c.l.b16 %v887
    %v970 = vunpack.c.h.b16 %v887
    %v971 = vunpack.c.l.b16 %v888
    %v972 = vunpack.c.h.b16 %v888
    %v973 = vunpack.c.l.b16 %v889
    %v974 = vunpack.c.h.b16 %v889
    %v975 = vunpack.c.l.b16 %v890
    %v976 = vunpack.c.h.b16 %v890
    %v977 = vunpack.c.l.b16 %v891
    %v978 = vunpack.c.h.b16 %v891
    %v979 = vunpack.c.l.b16 %v892
    %v980 = vunpack.c.h.b16 %v892
    %v981 = vunpack.c.l.b16 %v893
    %v982 = vunpack.c.h.b16 %v893
    %v983 = vunpack.c.l.b16 %v894
    %v984 = vunpack.c.h.b16 %v894
    %v985 = vunpack.c.l.b16 %v895
    %v986 = vunpack.c.h.b16 %v895
    %v987 = vunpack.c.l.b16 %v896
    %v988 = vunpack.c.h.b16 %v896
    %v989 = vunpack.c.l.b16 %v897
    %v990 = vunpack.c.h.b16 %v897
    %v991 = vunpack.c.l.b16 %v898
    %v992 = vunpack.c.h.b16 %v898
    %v993 = vunpack.c.l.b16 %v899
    %v994 = vunpack.c.h.b16 %v899
    %v995 = vunpack.c.l.b16 %v900
    %v996 = vunpack.c.h.b16 %v900
    %v997 = vunpack.c.l.b16 %v901
    %v998 = vunpack.c.h.b16 %v901
    %v999 = vunpack.c.l.b16 %v902
    %v1000 = vunpack.c.h.b16 %v902
    %v1001 = vunpack.c.l.b16 %v903
    %v1002 = vunpack.c.h.b16 %v903
    %v1003 = vunpack.c.l.b16 %v904
    %v1004 = vunpack.c.h.b16 %v904
    %v1005 = vunpack.c.l.b16 %v905
    %v1006 = vunpack.c.h.b16 %v905
    %v1007 = vunpack.c.l.b16 %v906
    %v1008 = vunpack.c.h.b16 %v906
    %v1009 = vunpack.c.l.b16 %v907
    %v1010 = vunpack.c.h.b16 %v907
    %v1011 = vunpack.c.l.b16 %v908
    %v1012 = vunpack.c.h.b16 %v908
    %v1013 = vunpack.c.l.b16 %v909
    %v1014 = vunpack.c.h.b16 %v909
    %v1015 = vunpack.c.l.b16 %v910
    %v1016 = vunpack.c.h.b16 %v910
    %v1017 = vunpack.c.l.b16 %v911
    %v1018 = vunpack.c.h.b16 %v911
    %v1019 = vunpack.c.l.b16 %v912
    %v1020 = vunpack.c.h.b16 %v912
    %v1021 = vpack.c.b16 %v959, %v957
    %v1022 = vpack.c.b16 %v960, %v958
    %v1023 = vpack.c.b16 %v963, %v961
    %v1024 = vpack.c.b16 %v964, %v962
    %v1025 = vpack.c.b16 %v967, %v965
    %v1026 = vpack.c.b16 %v968, %v966
    %v1027 = vpack.c.b16 %v971, %v969
    %v1028 = vpack.c.b16 %v972, %v970
    %v1029 = vpack.c.b16 %v975, %v973
    %v1030 = vpack.c.b16 %v976, %v974
    %v1031 = vpack.c.b16 %v979, %v977
    %v1032 = vpack.c.b16 %v980, %v978
    %v1033 = vpack.c.b16 %v983, %v981
    %v1034 = vpack.c.b16 %v984, %v982
    %v1035 = vpack.c.b16 %v987, %v985
    %v1036 = vpack.c.b16 %v988, %v986
    %v1037 = vpack.c.b16 %v991, %v989
    %v1038 = vpack.c.b16 %v992, %v990
    %v1039 = vpack.c.b16 %v995, %v993
    %v1040 = vpack.c.b16 %v996, %v994
    %v1041 = vpack.c.b16 %v999, %v997
    %v1042 = vpack.c.b16 %v1000, %v998
    %v1043 = vpack.c.b16 %v1003, %v1001
    %v1044 = vpack.c.b16 %v1004, %v1002
    %v1045 = vpack.c.b16 %v1007, %v1005
    %v1046 = vpack.c.b16 %v1008, %v1006
    %v1047 = vpack.c.b16 %v1011, %v1009
    %v1048 = vpack.c.b16 %v1012, %v1010
    %v1049 = vpack.c.b16 %v1015, %v1013
    %v1050 = vpack.c.b16 %v1016, %v1014
    %v1051 = vpack.c.b16 %v1019, %v1017
    %v1052 = vpack.c.b16 %v1020, %v1018
    %1085 = vmatprep.subr.bf16.mxu0 %v1036
    %1086 = vmatpush1.bf16.msra.mxu0 %v1035
    %1087 = vmatprep.subr.bf16.mxu0 %v1034
    %1088 = vmatpush1.bf16.msra.mxu0 %v1033
    %1089 = vmatprep.subr.bf16.mxu0 %v1032
    %1090 = vmatpush1.bf16.msra.mxu0 %v1031
    %1091 = vmatprep.subr.bf16.mxu0 %v1030
    %1092 = vmatpush1.bf16.msra.mxu0 %v1029
    %1093 = vmatprep.subr.bf16.mxu0 %v1028
    %1094 = vmatpush1.bf16.msra.mxu0 %v1027
    %1095 = vmatprep.subr.bf16.mxu0 %v1026
    %1096 = vmatpush1.bf16.msra.mxu0 %v1025
    %1097 = vmatprep.subr.bf16.mxu0 %v1024
    %1098 = vmatpush1.bf16.msra.mxu0 %v1023
    %1099 = vmatprep.subr.bf16.mxu0 %v1022
    %1100 = vmatpush1.bf16.msra.mxu0 %v1021
    %1101 = vmatprep.subr.bf16.mxu0 %v1052
    %1102 = vmatpush2.bf16.msra.mxu0 %v1051
    %1103 = vmatprep.subr.bf16.mxu0 %v1050
    %1104 = vmatpush2.bf16.msra.mxu0 %v1049
    %1105 = vmatprep.subr.bf16.mxu0 %v1048
    %1106 = vmatpush2.bf16.msra.mxu0 %v1047
    %1107 = vmatprep.subr.bf16.mxu0 %v1046
    %1108 = vmatpush2.bf16.msra.mxu0 %v1045
    %1109 = vmatprep.subr.bf16.mxu0 %v1044
    %1110 = vmatpush2.bf16.msra.mxu0 %v1043
    %1111 = vmatprep.subr.bf16.mxu0 %v1042
    %1112 = vmatpush2.bf16.msra.mxu0 %v1041
    %1113 = vmatprep.subr.bf16.mxu0 %v1040
    %1114 = vmatpush2.bf16.msra.mxu0 %v1039
    %1115 = vmatprep.subr.bf16.mxu0 %v1038
    %1116 = vmatpush2.bf16.msra.mxu0 %v1037
    %1117 = vmatprep.mubr.bf16.mxu0 %v880
    %1118 = vmatmul.mubr.bf16.gmra.mxu0 %v879
    %v1119 = vpop.f32.mrf.mxu0
    %v1120 = vadd.f32 %v918, %v1119
    %v1121 = vpop.f32.mrf.mxu0
    %v1122 = vadd.f32 %v922, %v1121
    %v1123 = vpop.f32.mrf.mxu0
    %v1124 = vpop.f32.mrf.mxu0
    %1125 = vdwg.mxu0
    %vm1126 = vcmp.gt.f32.partialorder %v1120, 0.0
    %vm1127 = vcmp.gt.f32.partialorder %v1122, 0.0
    %v1128 = vmul.f32 %v1120, 0.2
    %v1129 = vmul.f32 %v1122, 0.2
    %v1130 = vsel %vm1126, %v1120, %v1128
    %v1131 = vsel %vm1127, %v1122, %v1129
    %v1132 = vpack.c.bf16 %v1130, %v1130
    %v1133 = vpack.c.bf16 %v1131, %v1131
    %v1134 = vld [vmem:[#allocation9] sm:$0xf]
    %v1135 = vld [vmem:[#allocation9 + $0x4] sm:$0xf]
    %v1136 = vld [vmem:[#allocation9 + $0x8] sm:$0xf]
    %v1137 = vld [vmem:[#allocation9 + $0xc] sm:$0xf]
    %v1138 = vld [vmem:[#allocation9 + $0x10] sm:$0xf]
    %v1139 = vld [vmem:[#allocation9 + $0x14] sm:$0xf]
    %v1140 = vld [vmem:[#allocation9 + $0x18] sm:$0xf]
    %v1141 = vld [vmem:[#allocation9 + $0x1c] sm:$0xf]
    %v1142 = vld [vmem:[#allocation9 + $0x20] sm:$0xf]
    %v1143 = vld [vmem:[#allocation9 + $0x24] sm:$0xf]
    %v1144 = vld [vmem:[#allocation9 + $0x28] sm:$0xf]
    %v1145 = vld [vmem:[#allocation9 + $0x2c] sm:$0xf]
    %v1146 = vld [vmem:[#allocation9 + $0x30] sm:$0xf]
    %v1147 = vld [vmem:[#allocation9 + $0x34] sm:$0xf]
    %v1148 = vld [vmem:[#allocation9 + $0x38] sm:$0xf]
    %v1149 = vld [vmem:[#allocation9 + $0x3c] sm:$0xf]
    %v1150 = vld [vmem:[#allocation9 + $0x40] sm:$0xf]
    %v1151 = vld [vmem:[#allocation9 + $0x44] sm:$0xf]
    %v1152 = vld [vmem:[#allocation9 + $0x48] sm:$0xf]
    %v1153 = vld [vmem:[#allocation9 + $0x4c] sm:$0xf]
    %v1154 = vld [vmem:[#allocation9 + $0x50] sm:$0xf]
    %v1155 = vld [vmem:[#allocation9 + $0x54] sm:$0xf]
    %v1156 = vld [vmem:[#allocation9 + $0x58] sm:$0xf]
    %v1157 = vld [vmem:[#allocation9 + $0x5c] sm:$0xf]
    %v1158 = vld [vmem:[#allocation9 + $0x60] sm:$0xf]
    %v1159 = vld [vmem:[#allocation9 + $0x64] sm:$0xf]
    %v1160 = vld [vmem:[#allocation9 + $0x68] sm:$0xf]
    %v1161 = vld [vmem:[#allocation9 + $0x6c] sm:$0xf]
    %v1162 = vld [vmem:[#allocation9 + $0x70] sm:$0xf]
    %v1163 = vld [vmem:[#allocation9 + $0x74] sm:$0xf]
    %v1164 = vld [vmem:[#allocation9 + $0x78] sm:$0xf]
    %v1165 = vld [vmem:[#allocation9 + $0x7c] sm:$0xf]
    %v1166 = vld [vmem:[%s6] sm:$0x1]
    %v1168 = vlaneseq
    %v1169 = vshrl.u32 %v1168, 7
    %v1170 = vsub.s32 0, %v1169
    %v1171 = vrot.slane %v1166, %v1170
    %v1205 = vunpack.c.l.b16 %v1134
    %v1206 = vunpack.c.l.b16 %v1135
    %v1207 = vunpack.c.l.b16 %v1136
    %v1208 = vunpack.c.l.b16 %v1137
    %v1209 = vunpack.c.l.b16 %v1138
    %v1210 = vunpack.c.l.b16 %v1139
    %v1211 = vunpack.c.l.b16 %v1140
    %v1212 = vunpack.c.l.b16 %v1141
    %v1213 = vunpack.c.l.b16 %v1142
    %v1214 = vunpack.c.l.b16 %v1143
    %v1215 = vunpack.c.l.b16 %v1144
    %v1216 = vunpack.c.l.b16 %v1145
    %v1217 = vunpack.c.l.b16 %v1146
    %v1218 = vunpack.c.l.b16 %v1147
    %v1219 = vunpack.c.l.b16 %v1148
    %v1220 = vunpack.c.l.b16 %v1149
    %v1221 = vunpack.c.l.b16 %v1150
    %v1222 = vunpack.c.l.b16 %v1151
    %v1223 = vunpack.c.l.b16 %v1152
    %v1224 = vunpack.c.l.b16 %v1153
    %v1225 = vunpack.c.l.b16 %v1154
    %v1226 = vunpack.c.l.b16 %v1155
    %v1227 = vunpack.c.l.b16 %v1156
    %v1228 = vunpack.c.l.b16 %v1157
    %v1229 = vunpack.c.l.b16 %v1158
    %v1230 = vunpack.c.l.b16 %v1159
    %v1231 = vunpack.c.l.b16 %v1160
    %v1232 = vunpack.c.l.b16 %v1161
    %v1233 = vunpack.c.l.b16 %v1162
    %v1234 = vunpack.c.l.b16 %v1163
    %v1235 = vunpack.c.l.b16 %v1164
    %v1236 = vunpack.c.l.b16 %v1165
    %v1237 = vpack.c.b16 %v1206, %v1205
    %v1238 = vpack.c.b16 %v1208, %v1207
    %v1239 = vpack.c.b16 %v1210, %v1209
    %v1240 = vpack.c.b16 %v1212, %v1211
    %v1241 = vpack.c.b16 %v1214, %v1213
    %v1242 = vpack.c.b16 %v1216, %v1215
    %v1243 = vpack.c.b16 %v1218, %v1217
    %v1244 = vpack.c.b16 %v1220, %v1219
    %v1245 = vpack.c.b16 %v1222, %v1221
    %v1246 = vpack.c.b16 %v1224, %v1223
    %v1247 = vpack.c.b16 %v1226, %v1225
    %v1248 = vpack.c.b16 %v1228, %v1227
    %v1249 = vpack.c.b16 %v1230, %v1229
    %v1250 = vpack.c.b16 %v1232, %v1231
    %v1251 = vpack.c.b16 %v1234, %v1233
    %v1252 = vpack.c.b16 %v1236, %v1235
    %1269 = vmatprep.subr.bf16.mxu0 0
    %1270 = vmatpush1.bf16.msra.mxu0 %v1244
    %1271 = vmatprep.subr.bf16.mxu0 0
    %1272 = vmatpush1.bf16.msra.mxu0 %v1243
    %1273 = vmatprep.subr.bf16.mxu0 0
    %1274 = vmatpush1.bf16.msra.mxu0 %v1242
    %1275 = vmatprep.subr.bf16.mxu0 0
    %1276 = vmatpush1.bf16.msra.mxu0 %v1241
    %1277 = vmatprep.subr.bf16.mxu0 0
    %1278 = vmatpush1.bf16.msra.mxu0 %v1240
    %1279 = vmatprep.subr.bf16.mxu0 0
    %1280 = vmatpush1.bf16.msra.mxu0 %v1239
    %1281 = vmatprep.subr.bf16.mxu0 0
    %1282 = vmatpush1.bf16.msra.mxu0 %v1238
    %1283 = vmatprep.subr.bf16.mxu0 0
    %1284 = vmatpush1.bf16.msra.mxu0 %v1237
    %1285 = vmatprep.subr.bf16.mxu0 0
    %1286 = vmatpush2.bf16.msra.mxu0 %v1252
    %1287 = vmatprep.subr.bf16.mxu0 0
    %1288 = vmatpush2.bf16.msra.mxu0 %v1251
    %1289 = vmatprep.subr.bf16.mxu0 0
    %1290 = vmatpush2.bf16.msra.mxu0 %v1250
    %1291 = vmatprep.subr.bf16.mxu0 0
    %1292 = vmatpush2.bf16.msra.mxu0 %v1249
    %1293 = vmatprep.subr.bf16.mxu0 0
    %1294 = vmatpush2.bf16.msra.mxu0 %v1248
    %1295 = vmatprep.subr.bf16.mxu0 0
    %1296 = vmatpush2.bf16.msra.mxu0 %v1247
    %1297 = vmatprep.subr.bf16.mxu0 0
    %1298 = vmatpush2.bf16.msra.mxu0 %v1246
    %1299 = vmatprep.subr.bf16.mxu0 0
    %1300 = vmatpush2.bf16.msra.mxu0 %v1245
    %1301 = vmatprep.mubr.bf16.mxu0 %v1133
    %1302 = vmatmul.mubr.bf16.gmra.mxu0 %v1132
    %v1303 = vpop.f32.mrf.mxu0
    %v1304 = vadd.f32 %v1171, %v1303
    %v1305 = vpop.f32.mrf.mxu0
    %v1306 = vpop.f32.mrf.mxu0
    %v1307 = vpop.f32.mrf.mxu0
    %1308 = vdwg.mxu0
    %v1309 = vsub.f32 0.0, %v1304
    %v1310 = vmul.f32 %v1309, 1.442695
    %v1311 = vpow.pop %v1310
    %v1312 = vadd.f32 %v1311, 1.0
    %v1313 = vrcp.pop %v1312
    %v1314 = vmul.f32 1.0, %v1313
    %vm1315 = vcmask 7168
    %1316 = vst.msk [vmem:[%s7] sm:$0xff] %vm1315, %v1314
    // Predicated region
    $region50: #{discriminator_forward.1} parent=1 // pred_check
      _
    $region51: #{discriminator_forward.1} parent=1 // pred_check_branch
      %1318 = sbr.rel (0) target = $region53
    $region52: #{discriminator_forward.1} parent=1 // pred_region
      _
    $region53: #{discriminator_forward.1} parent=1 // pred_fallthru
      _
    // Predicated region
    $region54: #{discriminator_forward.1} parent=1 // pred_check
      _
    $region55: #{discriminator_forward.1} parent=1 // pred_check_branch
      %1320 = sbr.rel (0) target = $region57
    $region56: #{discriminator_forward.1} parent=1 // pred_region
      _
    $region57: #{discriminator_forward.1} parent=1 // pred_fallthru
      _
    %1321 = vsyncpa [#allocation3], 1
    %1322 = vsyncpa [#allocation5], 1
    %1323 = vsyncpa [#allocation8], 1

</llo_original>
